<compile_context>
chip_gen: v7x
topology: tpu7x:2x2x1
jax: 0.10.0
libtpu: 0.0.40
codegen_flags: <defaults>
</compile_context>

<pallas_src>
import functools

import numpy as np
import jax
import jax.numpy as jnp
from jax import lax
from jax.experimental import pallas as pl
from jax.experimental.pallas import tpu as pltpu


def _roi_align_kernel(batch_idx_ref, coords_ref, feat_ref, out_ref, *,
                      aligned_height, aligned_width, spatial_scale,
                      feat_h, feat_w):
    del batch_idx_ref  # only used by the index_map (data-dependent image fetch)
    n = pl.program_id(0)
    ah, aw = aligned_height, aligned_width
    hh, ww = feat_h, feat_w
    num_pix = ah * aw          # P = output pixels per ROI
    num_grid = hh * ww         # G = feature-map grid points

    # --- ROI scalars from SMEM (scalar prefetch), scaled to feature-map units.
    roi_start_w = coords_ref[n, 0] * spatial_scale
    roi_start_h = coords_ref[n, 1] * spatial_scale
    roi_end_w = coords_ref[n, 2] * spatial_scale
    roi_end_h = coords_ref[n, 3] * spatial_scale

    roi_width = jnp.maximum(roi_end_w - roi_start_w + 1.0, 0.0)
    roi_height = jnp.maximum(roi_end_h - roi_start_h + 1.0, 0.0)
    bin_w = roi_width / float(aw - 1)
    bin_h = roi_height / float(ah - 1)

    # --- Build the (P, G) bilinear interpolation weight matrix with VPU math.
    p_idx = lax.broadcasted_iota(jnp.int32, (num_pix, num_grid), 0).astype(jnp.float32)
    g_idx = lax.broadcasted_iota(jnp.int32, (num_pix, num_grid), 1).astype(jnp.float32)

    # p -> (ph, pw), g -> (y, x) without integer div/mod: float mul + floor
    # (exact for these small integer ranges; +0.5 gives a safe rounding margin).
    ph = jnp.floor((p_idx + 0.5) * (1.0 / aw))
    pw = p_idx - ph * aw
    yy = jnp.floor((g_idx + 0.5) * (1.0 / ww))
    xx = g_idx - yy * ww

    h = ph * bin_h + roi_start_h
    w = pw * bin_w + roi_start_w
    hstart = jnp.minimum(jnp.floor(h), float(hh - 2))
    wstart = jnp.minimum(jnp.floor(w), float(ww - 2))
    h_ratio = h - hstart
    w_ratio = w - wstart

    wy = (jnp.where(yy == hstart, 1.0 - h_ratio, 0.0)
          + jnp.where(yy == hstart + 1.0, h_ratio, 0.0))
    wx = (jnp.where(xx == wstart, 1.0 - w_ratio, 0.0)
          + jnp.where(xx == wstart + 1.0, w_ratio, 0.0))
    valid = (h >= 0.0) & (h < float(hh)) & (w >= 0.0) & (w < float(ww))
    wmat = jnp.where(valid, wy * wx, 0.0)

    # --- One MXU contraction over the H*W grid: (P, G) @ (G, C) -> (P, C).
    feat = feat_ref[0]                                    # (G, C), C on lanes
    out = jnp.dot(wmat, feat, preferred_element_type=jnp.float32)
    out_ref[0] = out.astype(out_ref.dtype)                # single lane-dense store


def roi_align(features, rois, aligned_height, aligned_width, spatial_scale):
    """Pallas forward pass matching RoIAlign.forward (NCHW in, NCHW out)."""
    features = features.astype(jnp.float32)
    rois = rois.astype(jnp.float32)
    B, C, H, W = features.shape
    N = rois.shape[0]
    P = aligned_height * aligned_width
    G = H * W

    # NCHW -> (B, H*W, C): channels on the lane axis, grid points on sublanes.
    feat_flat = jnp.transpose(features, (0, 2, 3, 1)).reshape(B, G, C)
    batch_idx = rois[:, 0].astype(jnp.int32)   # (N,)   scalar-prefetch (SMEM)
    coords = rois[:, 1:5]                       # (N,4)  scalar-prefetch (SMEM)

    kernel = functools.partial(
        _roi_align_kernel,
        aligned_height=int(aligned_height), aligned_width=int(aligned_width),
        spatial_scale=float(spatial_scale), feat_h=H, feat_w=W)

    grid_spec = pltpu.PrefetchScalarGridSpec(
        num_scalar_prefetch=2,
        grid=(N,),
        in_specs=[
            # Source image picked by the prefetched ROI batch index; Pallas skips
            # the re-DMA when consecutive ROIs come from the same image.
            pl.BlockSpec((1, G, C), lambda n, bi, co: (bi[n], 0, 0)),
        ],
        out_specs=pl.BlockSpec((1, P, C), lambda n, bi, co: (n, 0, 0)),
    )

    out = pl.pallas_call(
        kernel,
        out_shape=jax.ShapeDtypeStruct((N, P, C), jnp.float32),
        grid_spec=grid_spec,
        compiler_params=pltpu.CompilerParams(
            dimension_semantics=("arbitrary",)),
    )(batch_idx, coords, feat_flat)

    # (N, P, C) -> (N, C, AH, AW)
    out = out.reshape(N, aligned_height, aligned_width, C)
    return jnp.transpose(out, (0, 3, 1, 2))


def roi_align_ref(features, rois, aligned_height, aligned_width, spatial_scale):
    """NumPy reference mirroring the original C roi_align_forward (f32 math)."""
    feats = np.asarray(features, dtype=np.float32)
    r = np.asarray(rois, dtype=np.float32)
    B, C, H, W = feats.shape
    N = r.shape[0]
    AH, AW = aligned_height, aligned_width
    scale = np.float32(spatial_scale)
    out = np.zeros((N, C, AH, AW), dtype=np.float32)
    for n in range(N):
        b = int(r[n, 0])
        sw = r[n, 1] * scale
        sh = r[n, 2] * scale
        ew = r[n, 3] * scale
        eh = r[n, 4] * scale
        rw = np.maximum(ew - sw + np.float32(1.0), np.float32(0.0))
        rh = np.maximum(eh - sh + np.float32(1.0), np.float32(0.0))
        bw = rw / np.float32(AW - 1)
        bh = rh / np.float32(AH - 1)
        for ph in range(AH):
            for pw in range(AW):
                h = np.float32(ph) * bh + sh
                w = np.float32(pw) * bw + sw
                if h < 0 or h >= H or w < 0 or w >= W:
                    continue  # stays zero
                hstart = int(min(np.floor(h), H - 2))
                wstart = int(min(np.floor(w), W - 2))
                hr = float(h) - hstart
                wr = float(w) - wstart
                ul = feats[b, :, hstart, wstart]
                ur = feats[b, :, hstart, wstart + 1]
                dl = feats[b, :, hstart + 1, wstart]
                dr = feats[b, :, hstart + 1, wstart + 1]
                out[n, :, ph, pw] = (ul * (1.0 - hr) * (1.0 - wr)
                                     + ur * (1.0 - hr) * wr
                                     + dl * hr * (1.0 - wr)
                                     + dr * hr * wr)
    return out


if __name__ == "__main__":
    key = jax.random.PRNGKey(0)
    B, C, H, W = 2, 4, 16, 16
    aligned_height, aligned_width = 7, 7
    spatial_scale = 0.5

    features = jax.random.normal(key, (B, C, H, W), jnp.float32)
    # [batch_idx, x1, y1, x2, y2]; last two ROIs exercise the out-of-bounds
    # zero-fill path (right edge and negative coordinates).
    rois = jnp.array([
        [0.0,  2.0,  3.0, 20.0, 24.0],
        [1.0,  0.0,  0.0, 27.0, 29.0],
        [0.0, 10.0,  8.0, 38.0, 27.0],
        [1.0, -8.0, -6.0, 18.0, 16.0],
    ], jnp.float32)

    out = roi_align(features, rois, aligned_height, aligned_width, spatial_scale)
    out = jax.block_until_ready(out)

    ref = roi_align_ref(np.asarray(features), np.asarray(rois),
                        aligned_height, aligned_width, spatial_scale)
    assert out.shape == (rois.shape[0], C, aligned_height, aligned_width)
    assert np.allclose(np.asarray(out), ref, atol=1e-4, rtol=1e-4), "mismatch vs reference"

    print("KERNEL_OK")
</pallas_src>

<mosaic_0001>
module attributes {stable_mosaic.version = 11 : i64} {
  func.func @_roi_align_kernel(%arg0: i32, %arg1: memref<4xi32, #tpu.memory_space<smem>>, %arg2: memref<4x4xf32, #tpu.memory_space<smem>>, %arg3: memref<1x256x4xf32, #tpu.memory_space<vmem>>, %arg4: memref<1x49x4xf32, #tpu.memory_space<vmem>>) attributes {dimension_semantics = [#tpu.dimension_semantics<arbitrary>], iteration_bounds = array<i64: 4>, scalar_prefetch = 2 : i64, scratch_operands = 0 : i64, tpu.core_type = #tpu.core_type<tc>, window_params = [{transform_indices = @transform_0, window_bounds = array<i64: 1, 256, 4>}, {transform_indices = @transform_1, window_bounds = array<i64: 1, 49, 4>}]} {
    %0 = arith.index_cast %arg0 : i32 to index
    %c0 = arith.constant 0 : index
    %1 = memref.load %arg2[%0, %c0] : memref<4x4xf32, #tpu.memory_space<smem>>
    %cst = arith.constant 5.000000e-01 : f32
    %2 = arith.mulf %1, %cst : f32
    %3 = arith.index_cast %arg0 : i32 to index
    %c1 = arith.constant 1 : index
    %4 = memref.load %arg2[%3, %c1] : memref<4x4xf32, #tpu.memory_space<smem>>
    %cst_0 = arith.constant 5.000000e-01 : f32
    %5 = arith.mulf %4, %cst_0 : f32
    %6 = arith.index_cast %arg0 : i32 to index
    %c2 = arith.constant 2 : index
    %7 = memref.load %arg2[%6, %c2] : memref<4x4xf32, #tpu.memory_space<smem>>
    %cst_1 = arith.constant 5.000000e-01 : f32
    %8 = arith.mulf %7, %cst_1 : f32
    %9 = arith.index_cast %arg0 : i32 to index
    %c3 = arith.constant 3 : index
    %10 = memref.load %arg2[%9, %c3] : memref<4x4xf32, #tpu.memory_space<smem>>
    %cst_2 = arith.constant 5.000000e-01 : f32
    %11 = arith.mulf %10, %cst_2 : f32
    %12 = arith.subf %8, %2 : f32
    %cst_3 = arith.constant 1.000000e+00 : f32
    %13 = arith.addf %12, %cst_3 : f32
    %cst_4 = arith.constant 0.000000e+00 : f32
    %14 = arith.maximumf %13, %cst_4 : f32
    %15 = arith.subf %11, %5 : f32
    %cst_5 = arith.constant 1.000000e+00 : f32
    %16 = arith.addf %15, %cst_5 : f32
    %cst_6 = arith.constant 0.000000e+00 : f32
    %17 = arith.maximumf %16, %cst_6 : f32
    %cst_7 = arith.constant 6.000000e+00 : f32
    %18 = arith.divf %14, %cst_7 : f32
    %cst_8 = arith.constant 6.000000e+00 : f32
    %19 = arith.divf %17, %cst_8 : f32
    %20 = tpu.iota {dimensions = array<i32: 0>} : vector<49x256xi32>
    %21 = arith.sitofp %20 : vector<49x256xi32> to vector<49x256xf32>
    %22 = tpu.iota {dimensions = array<i32: 1>} : vector<49x256xi32>
    %23 = arith.sitofp %22 : vector<49x256xi32> to vector<49x256xf32>
    %cst_9 = arith.constant 5.000000e-01 : f32
    %24 = vector.broadcast %cst_9 : f32 to vector<49x256xf32>
    %25 = arith.addf %21, %24 : vector<49x256xf32>
    %cst_10 = arith.constant 0.142857149 : f32
    %26 = vector.broadcast %cst_10 : f32 to vector<49x256xf32>
    %27 = arith.mulf %25, %26 : vector<49x256xf32>
    %28 = math.floor %27 : vector<49x256xf32>
    %cst_11 = arith.constant 7.000000e+00 : f32
    %29 = vector.broadcast %cst_11 : f32 to vector<49x256xf32>
    %30 = arith.mulf %28, %29 : vector<49x256xf32>
    %31 = arith.subf %21, %30 : vector<49x256xf32>
    %cst_12 = arith.constant 5.000000e-01 : f32
    %32 = vector.broadcast %cst_12 : f32 to vector<49x256xf32>
    %33 = arith.addf %23, %32 : vector<49x256xf32>
    %cst_13 = arith.constant 6.250000e-02 : f32
    %34 = vector.broadcast %cst_13 : f32 to vector<49x256xf32>
    %35 = arith.mulf %33, %34 : vector<49x256xf32>
    %36 = math.floor %35 : vector<49x256xf32>
    %cst_14 = arith.constant 1.600000e+01 : f32
    %37 = vector.broadcast %cst_14 : f32 to vector<49x256xf32>
    %38 = arith.mulf %36, %37 : vector<49x256xf32>
    %39 = arith.subf %23, %38 : vector<49x256xf32>
    %40 = vector.broadcast %19 : f32 to vector<49x256xf32>
    %41 = arith.mulf %28, %40 : vector<49x256xf32>
    %42 = vector.broadcast %5 : f32 to vector<49x256xf32>
    %43 = arith.addf %41, %42 : vector<49x256xf32>
    %44 = vector.broadcast %18 : f32 to vector<49x256xf32>
    %45 = arith.mulf %31, %44 : vector<49x256xf32>
    %46 = vector.broadcast %2 : f32 to vector<49x256xf32>
    %47 = arith.addf %45, %46 : vector<49x256xf32>
    %48 = math.floor %43 : vector<49x256xf32>
    %cst_15 = arith.constant 1.400000e+01 : f32
    %49 = vector.broadcast %cst_15 : f32 to vector<49x256xf32>
    %50 = arith.minimumf %48, %49 : vector<49x256xf32>
    %51 = math.floor %47 : vector<49x256xf32>
    %cst_16 = arith.constant 1.400000e+01 : f32
    %52 = vector.broadcast %cst_16 : f32 to vector<49x256xf32>
    %53 = arith.minimumf %51, %52 : vector<49x256xf32>
    %54 = arith.subf %43, %50 : vector<49x256xf32>
    %55 = arith.subf %47, %53 : vector<49x256xf32>
    %56 = arith.cmpf oeq, %36, %50 : vector<49x256xf32>
    %cst_17 = arith.constant 1.000000e+00 : f32
    %57 = vector.broadcast %cst_17 : f32 to vector<49x256xf32>
    %58 = arith.subf %57, %54 : vector<49x256xf32>
    %cst_18 = arith.constant 0.000000e+00 : f32
    %59 = vector.broadcast %cst_18 : f32 to vector<49x256xf32>
    %60 = arith.select %56, %58, %59 : vector<49x256xi1>, vector<49x256xf32>
    %cst_19 = arith.constant 1.000000e+00 : f32
    %61 = vector.broadcast %cst_19 : f32 to vector<49x256xf32>
    %62 = arith.addf %50, %61 : vector<49x256xf32>
    %63 = arith.cmpf oeq, %36, %62 : vector<49x256xf32>
    %cst_20 = arith.constant 0.000000e+00 : f32
    %64 = vector.broadcast %cst_20 : f32 to vector<49x256xf32>
    %65 = arith.select %63, %54, %64 : vector<49x256xi1>, vector<49x256xf32>
    %66 = arith.addf %60, %65 : vector<49x256xf32>
    %67 = arith.cmpf oeq, %39, %53 : vector<49x256xf32>
    %cst_21 = arith.constant 1.000000e+00 : f32
    %68 = vector.broadcast %cst_21 : f32 to vector<49x256xf32>
    %69 = arith.subf %68, %55 : vector<49x256xf32>
    %cst_22 = arith.constant 0.000000e+00 : f32
    %70 = vector.broadcast %cst_22 : f32 to vector<49x256xf32>
    %71 = arith.select %67, %69, %70 : vector<49x256xi1>, vector<49x256xf32>
    %cst_23 = arith.constant 1.000000e+00 : f32
    %72 = vector.broadcast %cst_23 : f32 to vector<49x256xf32>
    %73 = arith.addf %53, %72 : vector<49x256xf32>
    %74 = arith.cmpf oeq, %39, %73 : vector<49x256xf32>
    %cst_24 = arith.constant 0.000000e+00 : f32
    %75 = vector.broadcast %cst_24 : f32 to vector<49x256xf32>
    %76 = arith.select %74, %55, %75 : vector<49x256xi1>, vector<49x256xf32>
    %77 = arith.addf %71, %76 : vector<49x256xf32>
    %cst_25 = arith.constant 0.000000e+00 : f32
    %78 = vector.broadcast %cst_25 : f32 to vector<49x256xf32>
    %79 = arith.cmpf oge, %43, %78 : vector<49x256xf32>
    %cst_26 = arith.constant 1.600000e+01 : f32
    %80 = vector.broadcast %cst_26 : f32 to vector<49x256xf32>
    %81 = arith.cmpf olt, %43, %80 : vector<49x256xf32>
    %82 = arith.andi %79, %81 : vector<49x256xi1>
    %cst_27 = arith.constant 0.000000e+00 : f32
    %83 = vector.broadcast %cst_27 : f32 to vector<49x256xf32>
    %84 = arith.cmpf oge, %47, %83 : vector<49x256xf32>
    %85 = arith.andi %82, %84 : vector<49x256xi1>
    %cst_28 = arith.constant 1.600000e+01 : f32
    %86 = vector.broadcast %cst_28 : f32 to vector<49x256xf32>
    %87 = arith.cmpf olt, %47, %86 : vector<49x256xf32>
    %88 = arith.andi %85, %87 : vector<49x256xi1>
    %89 = arith.mulf %66, %77 : vector<49x256xf32>
    %cst_29 = arith.constant 0.000000e+00 : f32
    %90 = vector.broadcast %cst_29 : f32 to vector<49x256xf32>
    %91 = arith.select %88, %89, %90 : vector<49x256xi1>, vector<49x256xf32>
    %c0_30 = arith.constant 0 : index
    %c0_31 = arith.constant 0 : index
    %c0_32 = arith.constant 0 : index
    %92 = vector.load %arg3[%c0_30, %c0_31, %c0_32] : memref<1x256x4xf32, #tpu.memory_space<vmem>>, vector<1x256x4xf32>
    %93 = vector.shape_cast %92 : vector<1x256x4xf32> to vector<256x4xf32>
    %cst_33 = arith.constant dense<0.000000e+00> : vector<49x4xf32>
    %94 = tpu.matmul %91, %93, %cst_33 {dimension_numbers = #tpu.dot_dimension_numbers<[1], [0], [0], [1], [0, 0, 1, 1], [], []>} : vector<49x256xf32>, vector<256x4xf32>, vector<49x4xf32> -> vector<49x4xf32>
    %c0_34 = arith.constant 0 : index
    %c0_35 = arith.constant 0 : index
    %c0_36 = arith.constant 0 : index
    %95 = vector.load %arg4[%c0_34, %c0_35, %c0_36] : memref<1x49x4xf32, #tpu.memory_space<vmem>>, vector<1x49x4xf32>
    %96 = vector.shape_cast %95 : vector<1x49x4xf32> to vector<49x4xf32>
    %97 = vector.shape_cast %94 : vector<49x4xf32> to vector<1x49x4xf32>
    tpu.vector_store %arg4[%c0_34, %c0_35, %c0_36], %97 {strides = array<i32>} : memref<1x49x4xf32, #tpu.memory_space<vmem>>, vector<1x49x4xf32>,
    return
  }
  func.func @transform_0(%arg0: i32, %arg1: memref<4xi32, #tpu.memory_space<smem>>, %arg2: memref<4x4xf32, #tpu.memory_space<smem>>) -> (i32, i32, i32) {
    %0 = arith.index_cast %arg0 : i32 to index
    %1 = memref.load %arg1[%0] : memref<4xi32, #tpu.memory_space<smem>>
    %c0_i32 = arith.constant 0 : i32
    %c0_i32_0 = arith.constant 0 : i32
    %c0_i32_1 = arith.constant 0 : i32
    return %1, %c0_i32, %c0_i32_0 : i32, i32, i32
  }
  func.func @transform_1(%arg0: i32, %arg1: memref<4xi32, #tpu.memory_space<smem>>, %arg2: memref<4x4xf32, #tpu.memory_space<smem>>) -> (i32, i32, i32) {
    %c0_i32 = arith.constant 0 : i32
    %c0_i32_0 = arith.constant 0 : i32
    %c0_i32_1 = arith.constant 0 : i32
    return %arg0, %c0_i32, %c0_i32_0 : i32, i32, i32
  }
}

</mosaic_0001>

<llo_original>
// kernel: tpu_custom_call.1
$region0: #{tpu_custom_call.1}
  #allocation0 [shape = 'u32[]', space=smem, size = 0x4, offset = 0x4, fixed_abs, tag = 'smem constant byte address 0x4 - core index']
  #allocation1 [shape = 'u32[144,128]{1,0:T(1,128)}', space=vmem, size = 0x12000, scoped, tag = 'internal scratch']
  #allocation2 [shape = 's32[1]{0}', space=sflag, size = 0x4, scoped, tag = 'scoped memory for tpu_custom_call.1']
  #allocation3 [shape = 'u8[512]{0}', space=smem, size = 0x200, scoped, tag = 'prefetched SMEM operand 0']
  #allocation4 [shape = 'u8[2048]{0}', space=smem, size = 0x800, scoped, tag = 'prefetched SMEM operand 1']
  %s0 = inlined_call_operand.vmem [shape: s32[4], index: 0, kind: input, shape index: {}]
  %s1 = inlined_call_operand.vmem [shape: f32[4,4], index: 1, kind: input, shape index: {}]
  %s2 = inlined_call_operand.vmem [shape: f32[2,256,4], index: 2, kind: input, shape index: {}]
  %s3 = inlined_call_operand.vmem [shape: f32[4,49,4], index: 3, kind: output, shape index: {}]
  %s4 = sld [smem:[#allocation0]]
  $region37: #{tpu_custom_call.1} parent=0
    _
  %s6 = ssub.s32 1, %s4
  %s7 = scalar_select 0, %s6, %s4
  %s8 = sshll.u32 %s0, 4
  %s9 = int_to_ptr.vmem [resolvable:$true] %s8
  %11 = dma.vmem_to_smem %s9, 16, [#allocation3], [#allocation2]
  %s12 = sshll.u32 %s1, 4
  %s13 = int_to_ptr.vmem [resolvable:$true] %s12
  %15 = dma.vmem_to_smem %s13, 64, [#allocation4], [#allocation2]
  %16 = dma.done [#allocation2], 80
  %17 = sfence
  loop: start=0, step=1, limit=6
  $region2: #{tpu_custom_call.1} parent=0 // loop_pre_header
    _
  $region3: #{tpu_custom_call.1} parent=0 // loop_header
    %s19 = sphi 0, %s23
    %p20 = scmp.ge.s32.totalorder %s19, 6
    %s31 = sphi 0, %s33
    %s34 = sphi 0, %s31
    %s35 = sphi 0, %s34
    %s51 = sphi 0, %s35
    %s57 = sphi 0, %s59
    %s60 = sphi 0, %s57
    %s61 = sphi 0, %s60
    %s77 = sphi 0, %s61
  $region4: #{tpu_custom_call.1} parent=0 // loop_header_branch
    %22 = sbr.rel (%p20) target = $region8
  $region5: #{tpu_custom_call.1} parent=0 // loop_body
    %s24 = ssub.s32 %s19, 1
    %s25 = ssub.s32 %s19, 2
    %s26 = sadd.s32 %s19, 1
    %s27 = sld [smem:[#allocation3 + %s19]]
    %s28 = sld [smem:[#allocation3 + %s26]]
    %s29 = ssub.s32 %s27, %s28
    %p30 = scmp.eq.s32.totalorder %s29, 0
    %s32 = sadd.s32 %s31, 1
    %s33 = scalar_select %p30, %s31, %s32
    %p36 = pneg %p30
    %p37 = scmp.eq.s32.totalorder %s19, 3
    %p38 = por %p36, %p37
    %p39 = scmp.ne.s32.totalorder %s31, %s34
    %p40 = scmp.eq.s32.totalorder %s19, 0
    %p41 = por %p39, %p40
    %p42 = scmp.ne.s32.totalorder %s31, %s34
    %p43 = scmp.eq.s32.totalorder %s24, 3
    %p44 = por %p42, %p43
    %p45 = scmp.ne.s32.totalorder %s34, %s35
    %p46 = scmp.eq.s32.totalorder %s24, 0
    %p47 = por %p45, %p46
    %p48 = scmp.ne.s32.totalorder %s34, %s35
    %p49 = scmp.eq.s32.totalorder %s25, 3
    %p50 = por %p48, %p49
    %p52 = scmp.ne.s32.totalorder %s35, %s51
    %p53 = scmp.eq.s32.totalorder %s25, 0
    %p54 = por %p52, %p53
    %s55 = ssub.s32 %s19, %s26
    %p56 = scmp.eq.s32.totalorder %s55, 0
    %s58 = sadd.s32 %s57, 1
    %s59 = scalar_select %p56, %s57, %s58
    %p62 = pneg %p56
    %p63 = scmp.eq.s32.totalorder %s19, 3
    %p64 = por %p62, %p63
    %p65 = scmp.ne.s32.totalorder %s57, %s60
    %p66 = scmp.eq.s32.totalorder %s19, 0
    %p67 = por %p65, %p66
    %p68 = scmp.ne.s32.totalorder %s57, %s60
    %p69 = scmp.eq.s32.totalorder %s24, 3
    %p70 = por %p68, %p69
    %p71 = scmp.ne.s32.totalorder %s60, %s61
    %p72 = scmp.eq.s32.totalorder %s24, 0
    %p73 = por %p71, %p72
    %p74 = scmp.ne.s32.totalorder %s60, %s61
    %p75 = scmp.eq.s32.totalorder %s25, 3
    %p76 = por %p74, %p75
    %p78 = scmp.ne.s32.totalorder %s61, %s77
    %p79 = scmp.eq.s32.totalorder %s25, 0
    %p80 = por %p78, %p79
    %p81 = scmp.le.s32.totalorder 1, %s19
    %p82 = scmp.lt.s32.totalorder %s19, 5
    %p83 = pnand %p81, %p82
    %p84 = pneg %p83
    // Predicated region
    $region9: #{tpu_custom_call.1} parent=5 // pred_check
      _
    $region10: #{tpu_custom_call.1} parent=5 // pred_check_branch
      %86 = sbr.rel (%p83) target = $region12
    $region11: #{tpu_custom_call.1} parent=5 // pred_region
      %s87 = ssub.s32 %s19, 1
    $region12: #{tpu_custom_call.1} parent=5 // pred_fallthru
      _
    %p88 = scmp.lt.s32.totalorder %s19, 4
    // Predicated region
    $region13: #{tpu_custom_call.1} parent=5 // pred_check
      %p89 = pneg %p88
    $region14: #{tpu_custom_call.1} parent=5 // pred_check_branch
      %91 = sbr.rel (%p89) target = $region16
    $region15: #{tpu_custom_call.1} parent=5 // pred_region
      // Predicated region
      $region17: #{tpu_custom_call.1} parent=15 // pred_check
        %p92 = pneg %p41
      $region18: #{tpu_custom_call.1} parent=15 // pred_check_branch
        %94 = sbr.rel (%p92) target = $region20
      $region19: #{tpu_custom_call.1} parent=15 // pred_region
        %s95 = sld [smem:[#allocation3 + %s19]]
        %p96 = scmp.lt.s32.totalorder %s95, 1
        %s97 = scalar_select %p96, %s95, 1
        %s98 = smul.addr %s97, 32
        %s99 = smul.addr %s98, 8
        %s100 = scalar_lea.vmem %s2, %s99
        %s101 = sld [smem:[#allocation3 + %s19]]
      $region20: #{tpu_custom_call.1} parent=15 // pred_fallthru
        _
    $region16: #{tpu_custom_call.1} parent=5 // pred_fallthru
      _
    %p102 = scmp.le.s32.totalorder 1, %s19
    %p103 = scmp.lt.s32.totalorder %s19, 5
    %p104 = pnand %p102, %p103
    %p105 = pneg %p104
    // Predicated region
    $region21: #{tpu_custom_call.1} parent=5 // pred_check
      _
    $region22: #{tpu_custom_call.1} parent=5 // pred_check_branch
      %107 = sbr.rel (%p104) target = $region24
    $region23: #{tpu_custom_call.1} parent=5 // pred_region
      %s108 = ssub.s32 %s19, 1
      %s109 = sld [smem:[#allocation3 + %s24]]
      %p110 = scmp.lt.s32.totalorder %s109, 1
      %s111 = scalar_select %p110, %s109, 1
      %s112 = smul.addr %s111, 32
      %s113 = smul.addr %s112, 8
      %s114 = scalar_lea.vmem %s2, %s113
      %p115 = pneg %p47
      %p116 = pneg %p44
      %p117 = pneg %p73
      %p118 = pneg %p70
      %p119 = scmp.lt.s32.totalorder %s24, 3
      %s120 = scalar_select %p119, %s24, 3
      %s121 = smul.addr %s120, 7
      %s122 = smul.addr %s121, 8
      %s123 = scalar_lea.vmem %s3, %s122
      %s124 = sld [smem:[#allocation3 + %s24]]
      %p125 = scmp.lt.s32.totalorder %s124, 1
      %s126 = scalar_select %p125, %s124, 1
      %s127 = smul.addr %s126, 32
      %s128 = smul.addr %s127, 8
      %s129 = scalar_lea.vmem %s2, %s128
      %s130 = sld [smem:[#allocation3 + %s24]]
      %p131 = scmp.lt.s32.totalorder %s24, 3
      %s132 = scalar_select %p131, %s24, 3
      %s133 = smul.addr %s132, 7
      %s134 = smul.addr %s133, 8
      %s135 = scalar_lea.vmem %s3, %s134
      %s136 = smul.u32 %s24, 128
      %s137 = sld [smem:[#allocation4 + %s136]]
      %s138 = smul.f32 %s137, 0.5
      %s139 = sadd.s32 %s136, 1
      %s140 = sld [smem:[#allocation4 + %s139]]
      %s141 = smul.f32 %s140, 0.5
      %s142 = sadd.s32 %s136, 2
      %s143 = sld [smem:[#allocation4 + %s142]]
      %s144 = smul.f32 %s143, 0.5
      %s145 = sadd.s32 %s136, 3
      %s146 = sld [smem:[#allocation4 + %s145]]
      %s147 = smul.f32 %s146, 0.5
      %s148 = ssub.f32 %s144, %s138
      %s149 = sadd.f32 %s148, 1.0
      %s150 = smax.f32 %s149, 0.0
      %s151 = ssub.f32 %s147, %s141
      %s152 = sadd.f32 %s151, 1.0
      %s153 = smax.f32 %s152, 0.0
      %v154 = vrcp.pop 6.0
      %s155 = vtos %v154
      %s156 = smul.f32 %s150, %s155
      %v157 = vrcp.pop 6.0
      %s158 = vtos %v157
      %s159 = smul.f32 %s153, %s158
      %v160 = vlaneseq
      %v161 = vshrl.u32 %v160, 7
      %v162 = vadd.s32 %v161, 8
      %v163 = vadd.s32 %v161, 16
      %v164 = vadd.s32 %v161, 24
      %v165 = vadd.s32 %v161, 32
      %v166 = vadd.s32 %v161, 40
      %v167 = vadd.s32 %v161, 48
      %v168 = vcvt.s32.f32 %v161
      %v169 = vcvt.s32.f32 %v162
      %v170 = vcvt.s32.f32 %v163
      %v171 = vcvt.s32.f32 %v164
      %v172 = vcvt.s32.f32 %v165
      %v173 = vcvt.s32.f32 %v166
      %v174 = vcvt.s32.f32 %v167
      %v175 = vlaneseq
      %v176 = vand.u32 %v175, 127
      %v177 = vadd.s32 %v176, 128
      %v178 = vcvt.s32.f32 %v176
      %v179 = vcvt.s32.f32 %v177
      %v180 = vadd.f32 %v168, 0.5
      %v181 = vadd.f32 %v169, 0.5
      %v182 = vadd.f32 %v170, 0.5
      %v183 = vadd.f32 %v171, 0.5
      %v184 = vadd.f32 %v172, 0.5
      %v185 = vadd.f32 %v173, 0.5
      %v186 = vadd.f32 %v174, 0.5
      %v187 = vmul.f32 %v180, 0.14285715
      %v188 = vmul.f32 %v181, 0.14285715
      %v189 = vmul.f32 %v182, 0.14285715
      %v190 = vmul.f32 %v183, 0.14285715
      %v191 = vmul.f32 %v184, 0.14285715
      %v192 = vmul.f32 %v185, 0.14285715
      %v193 = vmul.f32 %v186, 0.14285715
      %v194 = vfloor.f32 %v187
      %v195 = vfloor.f32 %v188
      %v196 = vfloor.f32 %v189
      %v197 = vfloor.f32 %v190
      %v198 = vfloor.f32 %v191
      %v199 = vfloor.f32 %v192
      %v200 = vfloor.f32 %v193
      %v201 = vmul.f32 %v194, 7.0
      %v202 = vmul.f32 %v195, 7.0
      %v203 = vmul.f32 %v196, 7.0
      %v204 = vmul.f32 %v197, 7.0
      %v205 = vmul.f32 %v198, 7.0
      %v206 = vmul.f32 %v199, 7.0
      %v207 = vmul.f32 %v200, 7.0
      %v208 = vsub.f32 %v168, %v201
      %v209 = vsub.f32 %v169, %v202
      %v210 = vsub.f32 %v170, %v203
      %v211 = vsub.f32 %v171, %v204
      %v212 = vsub.f32 %v172, %v205
      %v213 = vsub.f32 %v173, %v206
      %v214 = vsub.f32 %v174, %v207
      %v215 = vadd.f32 %v178, 0.5
      %v216 = vadd.f32 %v179, 0.5
      %v217 = vmul.f32 %v215, 0.0625
      %v218 = vmul.f32 %v216, 0.0625
      %v219 = vfloor.f32 %v217
      %v220 = vfloor.f32 %v218
      %v221 = vmul.f32 %v219, 16.0
      %v222 = vmul.f32 %v220, 16.0
      %v223 = vsub.f32 %v178, %v221
      %v224 = vsub.f32 %v179, %v222
      %v225 = vstv %s159
      %v226 = vmul.f32 %v194, %v225
      %v227 = vmul.f32 %v195, %v225
      %v228 = vmul.f32 %v196, %v225
      %v229 = vmul.f32 %v197, %v225
      %v230 = vmul.f32 %v198, %v225
      %v231 = vmul.f32 %v199, %v225
      %v232 = vmul.f32 %v200, %v225
      %v233 = vstv %s141
      %v234 = vadd.f32 %v226, %v233
      %v235 = vadd.f32 %v227, %v233
      %v236 = vadd.f32 %v228, %v233
      %v237 = vadd.f32 %v229, %v233
      %v238 = vadd.f32 %v230, %v233
      %v239 = vadd.f32 %v231, %v233
      %v240 = vadd.f32 %v232, %v233
      %v241 = vstv %s156
      %v242 = vmul.f32 %v208, %v241
      %v243 = vmul.f32 %v209, %v241
      %v244 = vmul.f32 %v210, %v241
      %v245 = vmul.f32 %v211, %v241
      %v246 = vmul.f32 %v212, %v241
      %v247 = vmul.f32 %v213, %v241
      %v248 = vmul.f32 %v214, %v241
      %v249 = vstv %s138
      %v250 = vadd.f32 %v242, %v249
      %v251 = vadd.f32 %v243, %v249
      %v252 = vadd.f32 %v244, %v249
      %v253 = vadd.f32 %v245, %v249
      %v254 = vadd.f32 %v246, %v249
      %v255 = vadd.f32 %v247, %v249
      %v256 = vadd.f32 %v248, %v249
      %v257 = vfloor.f32 %v234
      %v258 = vfloor.f32 %v235
      %v259 = vfloor.f32 %v236
      %v260 = vfloor.f32 %v237
      %v261 = vfloor.f32 %v238
      %v262 = vfloor.f32 %v239
      %v263 = vfloor.f32 %v240
      %v264 = vmin.f32 %v257, 14.0
      %v265 = vmin.f32 %v258, 14.0
      %v266 = vmin.f32 %v259, 14.0
      %v267 = vmin.f32 %v260, 14.0
      %v268 = vmin.f32 %v261, 14.0
      %v269 = vmin.f32 %v262, 14.0
      %v270 = vmin.f32 %v263, 14.0
      %v271 = vfloor.f32 %v250
      %v272 = vfloor.f32 %v251
      %v273 = vfloor.f32 %v252
      %v274 = vfloor.f32 %v253
      %v275 = vfloor.f32 %v254
      %v276 = vfloor.f32 %v255
      %v277 = vfloor.f32 %v256
      %v278 = vmin.f32 %v271, 14.0
      %v279 = vmin.f32 %v272, 14.0
      %v280 = vmin.f32 %v273, 14.0
      %v281 = vmin.f32 %v274, 14.0
      %v282 = vmin.f32 %v275, 14.0
      %v283 = vmin.f32 %v276, 14.0
      %v284 = vmin.f32 %v277, 14.0
      %v285 = vsub.f32 %v234, %v264
      %v286 = vsub.f32 %v235, %v265
      %v287 = vsub.f32 %v236, %v266
      %v288 = vsub.f32 %v237, %v267
      %v289 = vsub.f32 %v238, %v268
      %v290 = vsub.f32 %v239, %v269
      %v291 = vsub.f32 %v240, %v270
      %v292 = vsub.f32 %v250, %v278
      %v293 = vsub.f32 %v251, %v279
      %v294 = vsub.f32 %v252, %v280
      %v295 = vsub.f32 %v253, %v281
      %v296 = vsub.f32 %v254, %v282
      %v297 = vsub.f32 %v255, %v283
      %v298 = vsub.f32 %v256, %v284
      %vm299 = vcmp.eq.f32.partialorder %v219, %v264
      %vm300 = vcmp.eq.f32.partialorder %v220, %v264
      %vm301 = vcmp.eq.f32.partialorder %v219, %v265
      %vm302 = vcmp.eq.f32.partialorder %v220, %v265
      %vm303 = vcmp.eq.f32.partialorder %v219, %v266
      %vm304 = vcmp.eq.f32.partialorder %v220, %v266
      %vm305 = vcmp.eq.f32.partialorder %v219, %v267
      %vm306 = vcmp.eq.f32.partialorder %v220, %v267
      %vm307 = vcmp.eq.f32.partialorder %v219, %v268
      %vm308 = vcmp.eq.f32.partialorder %v220, %v268
      %vm309 = vcmp.eq.f32.partialorder %v219, %v269
      %vm310 = vcmp.eq.f32.partialorder %v220, %v269
      %vm311 = vcmp.eq.f32.partialorder %v219, %v270
      %vm312 = vcmp.eq.f32.partialorder %v220, %v270
      %v313 = vsub.f32 1.0, %v285
      %v314 = vsub.f32 1.0, %v286
      %v315 = vsub.f32 1.0, %v287
      %v316 = vsub.f32 1.0, %v288
      %v317 = vsub.f32 1.0, %v289
      %v318 = vsub.f32 1.0, %v290
      %v319 = vsub.f32 1.0, %v291
      %v320 = vsel %vm299, %v313, 0.0
      %v321 = vsel %vm300, %v313, 0.0
      %v322 = vsel %vm301, %v314, 0.0
      %v323 = vsel %vm302, %v314, 0.0
      %v324 = vsel %vm303, %v315, 0.0
      %v325 = vsel %vm304, %v315, 0.0
      %v326 = vsel %vm305, %v316, 0.0
      %v327 = vsel %vm306, %v316, 0.0
      %v328 = vsel %vm307, %v317, 0.0
      %v329 = vsel %vm308, %v317, 0.0
      %v330 = vsel %vm309, %v318, 0.0
      %v331 = vsel %vm310, %v318, 0.0
      %v332 = vsel %vm311, %v319, 0.0
      %v333 = vsel %vm312, %v319, 0.0
      %v334 = vadd.f32 %v264, 1.0
      %v335 = vadd.f32 %v265, 1.0
      %v336 = vadd.f32 %v266, 1.0
      %v337 = vadd.f32 %v267, 1.0
      %v338 = vadd.f32 %v268, 1.0
      %v339 = vadd.f32 %v269, 1.0
      %v340 = vadd.f32 %v270, 1.0
      %vm341 = vcmp.eq.f32.partialorder %v219, %v334
      %vm342 = vcmp.eq.f32.partialorder %v220, %v334
      %vm343 = vcmp.eq.f32.partialorder %v219, %v335
      %vm344 = vcmp.eq.f32.partialorder %v220, %v335
      %vm345 = vcmp.eq.f32.partialorder %v219, %v336
      %vm346 = vcmp.eq.f32.partialorder %v220, %v336
      %vm347 = vcmp.eq.f32.partialorder %v219, %v337
      %vm348 = vcmp.eq.f32.partialorder %v220, %v337
      %vm349 = vcmp.eq.f32.partialorder %v219, %v338
      %vm350 = vcmp.eq.f32.partialorder %v220, %v338
      %vm351 = vcmp.eq.f32.partialorder %v219, %v339
      %vm352 = vcmp.eq.f32.partialorder %v220, %v339
      %vm353 = vcmp.eq.f32.partialorder %v219, %v340
      %vm354 = vcmp.eq.f32.partialorder %v220, %v340
      %v355 = vsel %vm341, %v285, 0.0
      %v356 = vsel %vm342, %v285, 0.0
      %v357 = vsel %vm343, %v286, 0.0
      %v358 = vsel %vm344, %v286, 0.0
      %v359 = vsel %vm345, %v287, 0.0
      %v360 = vsel %vm346, %v287, 0.0
      %v361 = vsel %vm347, %v288, 0.0
      %v362 = vsel %vm348, %v288, 0.0
      %v363 = vsel %vm349, %v289, 0.0
      %v364 = vsel %vm350, %v289, 0.0
      %v365 = vsel %vm351, %v290, 0.0
      %v366 = vsel %vm352, %v290, 0.0
      %v367 = vsel %vm353, %v291, 0.0
      %v368 = vsel %vm354, %v291, 0.0
      %v369 = vadd.f32 %v320, %v355
      %v370 = vadd.f32 %v321, %v356
      %v371 = vadd.f32 %v322, %v357
      %v372 = vadd.f32 %v323, %v358
      %v373 = vadd.f32 %v324, %v359
      %v374 = vadd.f32 %v325, %v360
      %v375 = vadd.f32 %v326, %v361
      %v376 = vadd.f32 %v327, %v362
      %v377 = vadd.f32 %v328, %v363
      %v378 = vadd.f32 %v329, %v364
      %v379 = vadd.f32 %v330, %v365
      %v380 = vadd.f32 %v331, %v366
      %v381 = vadd.f32 %v332, %v367
      %v382 = vadd.f32 %v333, %v368
      %vm383 = vcmp.eq.f32.partialorder %v223, %v278
      %vm384 = vcmp.eq.f32.partialorder %v224, %v278
      %vm385 = vcmp.eq.f32.partialorder %v223, %v279
      %vm386 = vcmp.eq.f32.partialorder %v224, %v279
      %vm387 = vcmp.eq.f32.partialorder %v223, %v280
      %vm388 = vcmp.eq.f32.partialorder %v224, %v280
      %vm389 = vcmp.eq.f32.partialorder %v223, %v281
      %vm390 = vcmp.eq.f32.partialorder %v224, %v281
      %vm391 = vcmp.eq.f32.partialorder %v223, %v282
      %vm392 = vcmp.eq.f32.partialorder %v224, %v282
      %vm393 = vcmp.eq.f32.partialorder %v223, %v283
      %vm394 = vcmp.eq.f32.partialorder %v224, %v283
      %vm395 = vcmp.eq.f32.partialorder %v223, %v284
      %vm396 = vcmp.eq.f32.partialorder %v224, %v284
      %v397 = vsub.f32 1.0, %v292
      %v398 = vsub.f32 1.0, %v293
      %v399 = vsub.f32 1.0, %v294
      %v400 = vsub.f32 1.0, %v295
      %v401 = vsub.f32 1.0, %v296
      %v402 = vsub.f32 1.0, %v297
      %v403 = vsub.f32 1.0, %v298
      %v404 = vsel %vm383, %v397, 0.0
      %v405 = vsel %vm384, %v397, 0.0
      %v406 = vsel %vm385, %v398, 0.0
      %v407 = vsel %vm386, %v398, 0.0
      %v408 = vsel %vm387, %v399, 0.0
      %v409 = vsel %vm388, %v399, 0.0
      %v410 = vsel %vm389, %v400, 0.0
      %v411 = vsel %vm390, %v400, 0.0
      %v412 = vsel %vm391, %v401, 0.0
      %v413 = vsel %vm392, %v401, 0.0
      %v414 = vsel %vm393, %v402, 0.0
      %v415 = vsel %vm394, %v402, 0.0
      %v416 = vsel %vm395, %v403, 0.0
      %v417 = vsel %vm396, %v403, 0.0
      %v418 = vadd.f32 %v278, 1.0
      %v419 = vadd.f32 %v279, 1.0
      %v420 = vadd.f32 %v280, 1.0
      %v421 = vadd.f32 %v281, 1.0
      %v422 = vadd.f32 %v282, 1.0
      %v423 = vadd.f32 %v283, 1.0
      %v424 = vadd.f32 %v284, 1.0
      %vm425 = vcmp.eq.f32.partialorder %v223, %v418
      %vm426 = vcmp.eq.f32.partialorder %v224, %v418
      %vm427 = vcmp.eq.f32.partialorder %v223, %v419
      %vm428 = vcmp.eq.f32.partialorder %v224, %v419
      %vm429 = vcmp.eq.f32.partialorder %v223, %v420
      %vm430 = vcmp.eq.f32.partialorder %v224, %v420
      %vm431 = vcmp.eq.f32.partialorder %v223, %v421
      %vm432 = vcmp.eq.f32.partialorder %v224, %v421
      %vm433 = vcmp.eq.f32.partialorder %v223, %v422
      %vm434 = vcmp.eq.f32.partialorder %v224, %v422
      %vm435 = vcmp.eq.f32.partialorder %v223, %v423
      %vm436 = vcmp.eq.f32.partialorder %v224, %v423
      %vm437 = vcmp.eq.f32.partialorder %v223, %v424
      %vm438 = vcmp.eq.f32.partialorder %v224, %v424
      %v439 = vsel %vm425, %v292, 0.0
      %v440 = vsel %vm426, %v292, 0.0
      %v441 = vsel %vm427, %v293, 0.0
      %v442 = vsel %vm428, %v293, 0.0
      %v443 = vsel %vm429, %v294, 0.0
      %v444 = vsel %vm430, %v294, 0.0
      %v445 = vsel %vm431, %v295, 0.0
      %v446 = vsel %vm432, %v295, 0.0
      %v447 = vsel %vm433, %v296, 0.0
      %v448 = vsel %vm434, %v296, 0.0
      %v449 = vsel %vm435, %v297, 0.0
      %v450 = vsel %vm436, %v297, 0.0
      %v451 = vsel %vm437, %v298, 0.0
      %v452 = vsel %vm438, %v298, 0.0
      %v453 = vadd.f32 %v404, %v439
      %v454 = vadd.f32 %v405, %v440
      %v455 = vadd.f32 %v406, %v441
      %v456 = vadd.f32 %v407, %v442
      %v457 = vadd.f32 %v408, %v443
      %v458 = vadd.f32 %v409, %v444
      %v459 = vadd.f32 %v410, %v445
      %v460 = vadd.f32 %v411, %v446
      %v461 = vadd.f32 %v412, %v447
      %v462 = vadd.f32 %v413, %v448
      %v463 = vadd.f32 %v414, %v449
      %v464 = vadd.f32 %v415, %v450
      %v465 = vadd.f32 %v416, %v451
      %v466 = vadd.f32 %v417, %v452
      %vm467 = vcmp.ge.f32.partialorder %v234, 0.0
      %vm468 = vcmp.ge.f32.partialorder %v235, 0.0
      %vm469 = vcmp.ge.f32.partialorder %v236, 0.0
      %vm470 = vcmp.ge.f32.partialorder %v237, 0.0
      %vm471 = vcmp.ge.f32.partialorder %v238, 0.0
      %vm472 = vcmp.ge.f32.partialorder %v239, 0.0
      %vm473 = vcmp.ge.f32.partialorder %v240, 0.0
      %vm474 = vcmp.lt.f32.partialorder %v234, 16.0
      %vm475 = vcmp.lt.f32.partialorder %v235, 16.0
      %vm476 = vcmp.lt.f32.partialorder %v236, 16.0
      %vm477 = vcmp.lt.f32.partialorder %v237, 16.0
      %vm478 = vcmp.lt.f32.partialorder %v238, 16.0
      %vm479 = vcmp.lt.f32.partialorder %v239, 16.0
      %vm480 = vcmp.lt.f32.partialorder %v240, 16.0
      %vm481 = vmand %vm467, %vm474
      %vm482 = vmand %vm468, %vm475
      %vm483 = vmand %vm469, %vm476
      %vm484 = vmand %vm470, %vm477
      %vm485 = vmand %vm471, %vm478
      %vm486 = vmand %vm472, %vm479
      %vm487 = vmand %vm473, %vm480
      %vm488 = vcmp.ge.f32.partialorder %v250, 0.0
      %vm489 = vcmp.ge.f32.partialorder %v251, 0.0
      %vm490 = vcmp.ge.f32.partialorder %v252, 0.0
      %vm491 = vcmp.ge.f32.partialorder %v253, 0.0
      %vm492 = vcmp.ge.f32.partialorder %v254, 0.0
      %vm493 = vcmp.ge.f32.partialorder %v255, 0.0
      %vm494 = vcmp.ge.f32.partialorder %v256, 0.0
      %vm495 = vmand %vm481, %vm488
      %vm496 = vmand %vm482, %vm489
      %vm497 = vmand %vm483, %vm490
      %vm498 = vmand %vm484, %vm491
      %vm499 = vmand %vm485, %vm492
      %vm500 = vmand %vm486, %vm493
      %vm501 = vmand %vm487, %vm494
      %vm502 = vcmp.lt.f32.partialorder %v250, 16.0
      %vm503 = vcmp.lt.f32.partialorder %v251, 16.0
      %vm504 = vcmp.lt.f32.partialorder %v252, 16.0
      %vm505 = vcmp.lt.f32.partialorder %v253, 16.0
      %vm506 = vcmp.lt.f32.partialorder %v254, 16.0
      %vm507 = vcmp.lt.f32.partialorder %v255, 16.0
      %vm508 = vcmp.lt.f32.partialorder %v256, 16.0
      %vm509 = vmand %vm495, %vm502
      %vm510 = vmand %vm496, %vm503
      %vm511 = vmand %vm497, %vm504
      %vm512 = vmand %vm498, %vm505
      %vm513 = vmand %vm499, %vm506
      %vm514 = vmand %vm500, %vm507
      %vm515 = vmand %vm501, %vm508
      %v516 = vmul.f32 %v369, %v453
      %v517 = vmul.f32 %v370, %v454
      %v518 = vmul.f32 %v371, %v455
      %v519 = vmul.f32 %v372, %v456
      %v520 = vmul.f32 %v373, %v457
      %v521 = vmul.f32 %v374, %v458
      %v522 = vmul.f32 %v375, %v459
      %v523 = vmul.f32 %v376, %v460
      %v524 = vmul.f32 %v377, %v461
      %v525 = vmul.f32 %v378, %v462
      %v526 = vmul.f32 %v379, %v463
      %v527 = vmul.f32 %v380, %v464
      %v528 = vmul.f32 %v381, %v465
      %v529 = vmul.f32 %v382, %v466
      %v530 = vsel %vm509, %v516, 0.0
      %v531 = vsel %vm509, %v517, 0.0
      %v532 = vsel %vm510, %v518, 0.0
      %v533 = vsel %vm510, %v519, 0.0
      %v534 = vsel %vm511, %v520, 0.0
      %v535 = vsel %vm511, %v521, 0.0
      %v536 = vsel %vm512, %v522, 0.0
      %v537 = vsel %vm512, %v523, 0.0
      %v538 = vsel %vm513, %v524, 0.0
      %v539 = vsel %vm513, %v525, 0.0
      %v540 = vsel %vm514, %v526, 0.0
      %v541 = vsel %vm514, %v527, 0.0
      %v542 = vsel %vm515, %v528, 0.0
      %v543 = vsel %vm515, %v529, 0.0
      %v544 = vld [vmem:[%s129] sm:$0xff]
      %v545 = vld [vmem:[%s129 + $0x8] sm:$0xff]
      %v546 = vld [vmem:[%s129 + $0x10] sm:$0xff]
      %v547 = vld [vmem:[%s129 + $0x18] sm:$0xff]
      %v548 = vld [vmem:[%s129 + $0x20] sm:$0xff]
      %v549 = vld [vmem:[%s129 + $0x28] sm:$0xff]
      %v550 = vld [vmem:[%s129 + $0x30] sm:$0xff]
      %v551 = vld [vmem:[%s129 + $0x38] sm:$0xff]
      %v552 = vld [vmem:[%s129 + $0x40] sm:$0xff]
      %v553 = vld [vmem:[%s129 + $0x48] sm:$0xff]
      %v554 = vld [vmem:[%s129 + $0x50] sm:$0xff]
      %v555 = vld [vmem:[%s129 + $0x58] sm:$0xff]
      %v556 = vld [vmem:[%s129 + $0x60] sm:$0xff]
      %v557 = vld [vmem:[%s129 + $0x68] sm:$0xff]
      %v558 = vld [vmem:[%s129 + $0x70] sm:$0xff]
      %v559 = vld [vmem:[%s129 + $0x78] sm:$0xff]
      %v560 = vld [vmem:[%s129 + $0x80] sm:$0xff]
      %v561 = vld [vmem:[%s129 + $0x88] sm:$0xff]
      %v562 = vld [vmem:[%s129 + $0x90] sm:$0xff]
      %v563 = vld [vmem:[%s129 + $0x98] sm:$0xff]
      %v564 = vld [vmem:[%s129 + $0xa0] sm:$0xff]
      %v565 = vld [vmem:[%s129 + $0xa8] sm:$0xff]
      %v566 = vld [vmem:[%s129 + $0xb0] sm:$0xff]
      %v567 = vld [vmem:[%s129 + $0xb8] sm:$0xff]
      %v568 = vld [vmem:[%s129 + $0xc0] sm:$0xff]
      %v569 = vld [vmem:[%s129 + $0xc8] sm:$0xff]
      %v570 = vld [vmem:[%s129 + $0xd0] sm:$0xff]
      %v571 = vld [vmem:[%s129 + $0xd8] sm:$0xff]
      %v572 = vld [vmem:[%s129 + $0xe0] sm:$0xff]
      %v573 = vld [vmem:[%s129 + $0xe8] sm:$0xff]
      %v574 = vld [vmem:[%s129 + $0xf0] sm:$0xff]
      %v575 = vld [vmem:[%s129 + $0xf8] sm:$0xff]
      %576 = vmatprep.subr.mxu0 0.0
      %577 = vmatpush1.msra.mxu0 %v544
      %578 = vmatprep.subr.mxu0 0.0
      %579 = vmatpush1.msra.mxu0 %v545
      %580 = vmatprep.subr.mxu0 0.0
      %581 = vmatpush1.msra.mxu0 %v546
      %582 = vmatprep.subr.mxu0 0.0
      %583 = vmatpush1.msra.mxu0 %v547
      %584 = vmatprep.subr.mxu0 0.0
      %585 = vmatpush1.msra.mxu0 %v548
      %586 = vmatprep.subr.mxu0 0.0
      %587 = vmatpush1.msra.mxu0 %v549
      %588 = vmatprep.subr.mxu0 0.0
      %589 = vmatpush1.msra.mxu0 %v550
      %590 = vmatprep.subr.mxu0 0.0
      %591 = vmatpush1.msra.mxu0 %v551
      %592 = vmatprep.subr.mxu0 0.0
      %593 = vmatpush1.msra.mxu0 %v552
      %594 = vmatprep.subr.mxu0 0.0
      %595 = vmatpush1.msra.mxu0 %v553
      %596 = vmatprep.subr.mxu0 0.0
      %597 = vmatpush1.msra.mxu0 %v554
      %598 = vmatprep.subr.mxu0 0.0
      %599 = vmatpush1.msra.mxu0 %v555
      %600 = vmatprep.subr.mxu0 0.0
      %601 = vmatpush1.msra.mxu0 %v556
      %602 = vmatprep.subr.mxu0 0.0
      %603 = vmatpush1.msra.mxu0 %v557
      %604 = vmatprep.subr.mxu0 0.0
      %605 = vmatpush1.msra.mxu0 %v558
      %606 = vmatprep.subr.mxu0 0.0
      %607 = vmatpush1.msra.mxu0 %v559
      %608 = vmatprep.subr.mxu0 0.0
      %609 = vmatpush1.msra.mxu0 %v560
      %610 = vmatprep.subr.mxu0 0.0
      %611 = vmatpush1.msra.mxu0 %v561
      %612 = vmatprep.subr.mxu0 0.0
      %613 = vmatpush1.msra.mxu0 %v562
      %614 = vmatprep.subr.mxu0 0.0
      %615 = vmatpush1.msra.mxu0 %v563
      %616 = vmatprep.subr.mxu0 0.0
      %617 = vmatpush1.msra.mxu0 %v564
      %618 = vmatprep.subr.mxu0 0.0
      %619 = vmatpush1.msra.mxu0 %v565
      %620 = vmatprep.subr.mxu0 0.0
      %621 = vmatpush1.msra.mxu0 %v566
      %622 = vmatprep.subr.mxu0 0.0
      %623 = vmatpush1.msra.mxu0 %v567
      %624 = vmatprep.subr.mxu0 0.0
      %625 = vmatpush1.msra.mxu0 %v568
      %626 = vmatprep.subr.mxu0 0.0
      %627 = vmatpush1.msra.mxu0 %v569
      %628 = vmatprep.subr.mxu0 0.0
      %629 = vmatpush1.msra.mxu0 %v570
      %630 = vmatprep.subr.mxu0 0.0
      %631 = vmatpush1.msra.mxu0 %v571
      %632 = vmatprep.subr.mxu0 0.0
      %633 = vmatpush1.msra.mxu0 %v572
      %634 = vmatprep.subr.mxu0 0.0
      %635 = vmatpush1.msra.mxu0 %v573
      %636 = vmatprep.subr.mxu0 0.0
      %637 = vmatpush1.msra.mxu0 %v574
      %638 = vmatprep.subr.mxu0 0.0
      %639 = vmatpush1.msra.mxu0 %v575
      %640 = vmatprep.mubr.f32.mxu0 %v531
      %641 = vmatmul.mubr.f32.gmra.mrb[0].mxu0 %v530
      %v642 = vpop.f32.mrb[0].mxu0
      %v643 = vadd.f32 0.0, %v642
      %v644 = vpop.f32.mrb[0].mxu0
      %645 = vmatprep.mubr.f32.mxu0 %v533
      %646 = vmatmul.mubr.f32.gmra.mrb[0].mxu0 %v532
      %v647 = vpop.f32.mrb[0].mxu0
      %v648 = vadd.f32 0.0, %v647
      %v649 = vpop.f32.mrb[0].mxu0
      %650 = vmatprep.mubr.f32.mxu0 %v535
      %651 = vmatmul.mubr.f32.gmra.mrb[0].mxu0 %v534
      %v652 = vpop.f32.mrb[0].mxu0
      %v653 = vadd.f32 0.0, %v652
      %v654 = vpop.f32.mrb[0].mxu0
      %655 = vmatprep.mubr.f32.mxu0 %v537
      %656 = vmatmul.mubr.f32.gmra.mrb[0].mxu0 %v536
      %v657 = vpop.f32.mrb[0].mxu0
      %v658 = vadd.f32 0.0, %v657
      %v659 = vpop.f32.mrb[0].mxu0
      %660 = vmatprep.mubr.f32.mxu0 %v539
      %661 = vmatmul.mubr.f32.gmra.mrb[0].mxu0 %v538
      %v662 = vpop.f32.mrb[0].mxu0
      %v663 = vadd.f32 0.0, %v662
      %v664 = vpop.f32.mrb[0].mxu0
      %665 = vmatprep.mubr.f32.mxu0 %v541
      %666 = vmatmul.mubr.f32.gmra.mrb[0].mxu0 %v540
      %v667 = vpop.f32.mrb[0].mxu0
      %v668 = vadd.f32 0.0, %v667
      %v669 = vpop.f32.mrb[0].mxu0
      %670 = vmatprep.mubr.f32.mxu0 %v543
      %671 = vmatmul.mubr.f32.gmra.mrb[0].mxu0 %v542
      %v672 = vpop.f32.mrb[0].mxu0
      %v673 = vadd.f32 0.0, %v672
      %v674 = vpop.f32.mrb[0].mxu0
      %675 = vdwg.mxu0
      %vm676 = vcmask 31744
      %677 = vst.msk [vmem:[%s135] sm:$0xff] %vm676, %v643
      %678 = vst.msk [vmem:[%s135 + $0x8] sm:$0xff] %vm676, %v648
      %679 = vst.msk [vmem:[%s135 + $0x10] sm:$0xff] %vm676, %v653
      %680 = vst.msk [vmem:[%s135 + $0x18] sm:$0xff] %vm676, %v658
      %681 = vst.msk [vmem:[%s135 + $0x20] sm:$0xff] %vm676, %v663
      %682 = vst.msk [vmem:[%s135 + $0x28] sm:$0xff] %vm676, %v668
      %vm683 = vcmask 24576
      %684 = vst.msk [vmem:[%s135 + $0x30] sm:$0x1] %vm683, %v673
      %p685 = scmp.lt.s32.totalorder %s24, 3
      %s686 = scalar_select %p685, %s24, 3
      %s687 = smul.addr %s686, 7
      %s688 = smul.addr %s687, 8
      %s689 = scalar_lea.vmem %s3, %s688
      // Predicated region
      $region25: #{tpu_custom_call.1} parent=23 // pred_check
        %p690 = pneg %p70
      $region26: #{tpu_custom_call.1} parent=23 // pred_check_branch
        %692 = sbr.rel (%p690) target = $region28
      $region27: #{tpu_custom_call.1} parent=23 // pred_region
        _
      $region28: #{tpu_custom_call.1} parent=23 // pred_fallthru
        _
    $region24: #{tpu_custom_call.1} parent=5 // pred_fallthru
      _
    %p693 = scmp.le.s32.totalorder 2, %s19
    // Predicated region
    $region29: #{tpu_custom_call.1} parent=5 // pred_check
      %p694 = pneg %p693
    $region30: #{tpu_custom_call.1} parent=5 // pred_check_branch
      %696 = sbr.rel (%p694) target = $region32
    $region31: #{tpu_custom_call.1} parent=5 // pred_region
      %s697 = ssub.s32 %s19, 2
      // Predicated region
      $region33: #{tpu_custom_call.1} parent=31 // pred_check
        %p698 = pneg %p76
      $region34: #{tpu_custom_call.1} parent=31 // pred_check_branch
        %700 = sbr.rel (%p698) target = $region36
      $region35: #{tpu_custom_call.1} parent=31 // pred_region
        %p701 = scmp.lt.s32.totalorder %s25, 3
        %s702 = scalar_select %p701, %s25, 3
        %s703 = smul.addr %s702, 7
        %s704 = smul.addr %s703, 8
        %s705 = scalar_lea.vmem %s3, %s704
      $region36: #{tpu_custom_call.1} parent=31 // pred_fallthru
        _
    $region32: #{tpu_custom_call.1} parent=5 // pred_fallthru
      _
  $region6: #{tpu_custom_call.1} parent=0 // loop_footer
    %s23 = sadd.s32 1, %s19
  $region7: #{tpu_custom_call.1} parent=0 // loop_footer_branch
    %18 = sbr.rel target = $region3
  $region8: #{tpu_custom_call.1} parent=0 // loop_exit
    _

</llo_original>
